<compile_context>
chip_gen: v5e
topology: v5e:2x2
jax: 0.10.0
libtpu: 0.0.40
codegen_flags: <defaults>
</compile_context>

<pallas_src>
import functools

import jax
import jax.numpy as jnp
from jax.experimental import pallas as pl
from jax.experimental.pallas import tpu as pltpu

BN_EPS = 1e-8
F_PAD = 128  # lane-dense feature padding: every feature dim lives in one 128-lane vreg width


def _swish(x):
    # Swish(x) = x * sigmoid(x)  (sigmoid -> EUP, mul -> VPU; f32 everywhere, v5e-safe)
    return x * jax.nn.sigmoid(x)


def _batchnorm_swish(h, gamma, beta):
    """One-pass BatchNorm1d (training-mode batch stats, biased variance) + Swish.

    sum(h) and sum(h*h) are independent cross-sublane reductions (they overlap with
    each other and with the next layer's MXU pushes). var is clamped at 0 before the
    rsqrt to guard E[h^2] - mean^2 cancellation. BN is folded to per-feature
    scale/shift so the per-element work is a single fused multiply-add.
    Zero-padded feature columns (gamma = beta = 0) stay exactly 0.
    """
    inv_b = 1.0 / h.shape[0]
    s = jnp.sum(h, axis=0, keepdims=True)           # (1, F)
    ss = jnp.sum(h * h, axis=0, keepdims=True)      # (1, F)
    mean = s * inv_b
    var = jnp.maximum(ss * inv_b - mean * mean, 0.0)
    scale = gamma * jax.lax.rsqrt(var + BN_EPS)     # (1, F)
    shift = beta - mean * scale                     # (1, F)
    return _swish(h * scale + shift)


def mlp_kernel(x_ref, w_ref, bn_ref, out_ref):
    """Fused 3-layer MLP: (linear -> BN -> swish) x2 -> linear.

    x_ref  : (B, 128)      f32  lane-dense padded input
    w_ref  : (3, 128, 128) f32  padded weights [w0, w1, w2], (in, out) layout
    bn_ref : (4, 128)      f32  rows [gamma0, beta0, gamma1, beta1]
    out_ref: (B, 256)      f32  lanes [0,128) = final output (padded),
                                lanes [128,256) = latent activation (padded)
    All operands resident in VMEM; matmuls accumulate in f32 on the MXU; BN/Swish
    elementwise math stays f32 on VPU/XLU/EUP (v5e has no bf16 VALU/EUP).
    """
    x = x_ref[...]
    bn = bn_ref[...]

    # ---- layer 0: linear (no bias) + BN + swish ----
    h0 = jnp.dot(x, w_ref[0], preferred_element_type=jnp.float32)        # (B, 128)
    h0 = _batchnorm_swish(h0, bn[0:1, :], bn[1:2, :])

    # ---- layer 1: linear + BN + swish -> latent ----
    h1 = jnp.dot(h0, w_ref[1], preferred_element_type=jnp.float32)       # (B, 128)
    h1 = _batchnorm_swish(h1, bn[2:3, :], bn[3:4, :])

    # ---- layer 2 (final): linear only ----
    out = jnp.dot(h1, w_ref[2], preferred_element_type=jnp.float32)      # (B, 128)

    # Two unmasked, 128-lane-aligned slice stores (no concatenate intermediate).
    out_ref[:, :F_PAD] = out
    out_ref[:, F_PAD:] = h1


def _pad_row(a):
    """(1, c) -> (1, F_PAD), zero-padded f32."""
    return jnp.pad(a.astype(jnp.float32), ((0, 0), (0, F_PAD - a.shape[1])))


def _pad_mat(a):
    """(r, c) -> (F_PAD, F_PAD), zero-padded f32."""
    r, c = a.shape
    return jnp.pad(a.astype(jnp.float32), ((0, F_PAD - r), (0, F_PAD - c)))


def prepare_params(w0, g0, b0, w1, g1, b1, w2):
    """Pad & pack static operands ONCE (hoisted out of the per-call path)."""
    assert max(w0.shape + w1.shape + w2.shape) <= F_PAD
    w_slab = jnp.stack([_pad_mat(w0), _pad_mat(w1), _pad_mat(w2)], axis=0)       # (3,128,128)
    bn_slab = jnp.concatenate(
        [_pad_row(g0), _pad_row(b0), _pad_row(g1), _pad_row(b1)], axis=0)        # (4,128)
    return w_slab, bn_slab


@functools.partial(jax.jit, static_argnames=("d_out", "d_latent"))
def mlp_forward(x, w_slab, bn_slab, *, d_out, d_latent):
    """x: (B, in_depth) f32. w_slab/bn_slab from prepare_params. Returns (out, latent)."""
    B, d_in = x.shape
    xp = jnp.pad(x.astype(jnp.float32), ((0, 0), (0, F_PAD - d_in)))     # only x padded per call

    full = lambda a: pl.BlockSpec(a.shape, lambda: tuple(0 for _ in a.shape))

    flops = 2 * B * 3 * F_PAD * F_PAD                       # three (B,128)x(128,128) matmuls
    transcendentals = 2 * B * F_PAD + 2 * F_PAD             # sigmoids + rsqrts
    bytes_accessed = (xp.size + w_slab.size + bn_slab.size + B * 2 * F_PAD) * 4

    slab = pl.pallas_call(
        mlp_kernel,
        out_shape=jax.ShapeDtypeStruct((B, 2 * F_PAD), jnp.float32),
        grid=(),
        in_specs=[full(xp), full(w_slab), full(bn_slab)],
        out_specs=pl.BlockSpec((B, 2 * F_PAD), lambda: (0, 0)),
        compiler_params=pltpu.CompilerParams(vmem_limit_bytes=32 * 1024 * 1024),
        cost_estimate=pl.CostEstimate(flops=flops,
                                      transcendentals=transcendentals,
                                      bytes_accessed=bytes_accessed),
    )(xp, w_slab, bn_slab)

    # TODO(synk): if batch ever needs to be tiled over a grid axis (v7x dual-TC / VMEM),
    # BN statistics must become a cross-tile two-pass reduction to stay full-batch exact.
    return slab[:, :d_out], slab[:, F_PAD:F_PAD + d_latent]


def init_params(key, in_depth, hidden_depths, out_depth):
    """nn.Linear default init (uniform +/- 1/sqrt(fan_in)), BN defaults (gamma=1, beta=0).
    Weights returned pre-transposed to (in, out), float32."""
    depths = [in_depth, *hidden_depths, out_depth]
    keys = jax.random.split(key, len(depths) - 1)
    weights = []
    for i in range(len(depths) - 1):
        bound = 1.0 / jnp.sqrt(depths[i])
        w = jax.random.uniform(keys[i], (depths[i], depths[i + 1]),
                               minval=-bound, maxval=bound, dtype=jnp.float32)
        weights.append(w)
    gammas = [jnp.ones((1, d), jnp.float32) for d in hidden_depths]
    betas = [jnp.zeros((1, d), jnp.float32) for d in hidden_depths]
    return weights, gammas, betas


if __name__ == "__main__":
    # Small shapes consistent with the module's forward: x is (batch, in_depth).
    batch, in_depth = 64, 16
    hidden_depths = [32, 32]
    out_depth = 8

    key = jax.random.PRNGKey(0)
    kx, kp = jax.random.split(key)
    x = jax.random.normal(kx, (batch, in_depth), dtype=jnp.float32)

    (w0, w1, w2), (g0, g1), (b0, b1) = init_params(kp, in_depth, hidden_depths, out_depth)

    # Static operands padded/packed exactly once.
    w_slab, bn_slab = prepare_params(w0, g0, b0, w1, g1, b1, w2)
    w_slab, bn_slab = jax.block_until_ready((w_slab, bn_slab))

    out, latent = mlp_forward(x, w_slab, bn_slab,
                              d_out=out_depth, d_latent=hidden_depths[1])
    jax.block_until_ready((out, latent))
    assert out.shape == (batch, out_depth) and latent.shape == (batch, hidden_depths[1])

    # Pure-JAX f32 reference (standard two-pass BN, high-precision matmuls) -- matches
    # the PyTorch forward semantics.
    def ref(x):
        hp = jax.lax.Precision.HIGHEST

        def bn(h, g, b):
            m = h.mean(0, keepdims=True)
            v = ((h - m) ** 2).mean(0, keepdims=True)
            return (h - m) * jax.lax.rsqrt(v + BN_EPS) * g + b

        h = jnp.dot(x, w0, precision=hp)
        h = _swish(bn(h, g0, b0))
        h = jnp.dot(h, w1, precision=hp)
        lat = _swish(bn(h, g1, b1))
        o = jnp.dot(lat, w2, precision=hp)
        return o, lat

    ro, rl = ref(x)
    assert jnp.allclose(out, ro, atol=5e-3, rtol=5e-3)
    assert jnp.allclose(latent, rl, atol=5e-3, rtol=5e-3)

    print("KERNEL_OK")
</pallas_src>

<mosaic_0001>
module attributes {stable_mosaic.version = 11 : i64} {
  func.func @mlp_kernel(%arg0: memref<64x128xf32, #tpu.memory_space<vmem>>, %arg1: memref<3x128x128xf32, #tpu.memory_space<vmem>>, %arg2: memref<4x128xf32, #tpu.memory_space<vmem>>, %arg3: memref<64x256xf32, #tpu.memory_space<vmem>>) attributes {dimension_semantics = [], scalar_prefetch = 0 : i64, scratch_operands = 0 : i64, tpu.core_type = #tpu.core_type<tc>} {
    %c0 = arith.constant 0 : index
    %c0_0 = arith.constant 0 : index
    %0 = vector.load %arg0[%c0, %c0_0] : memref<64x128xf32, #tpu.memory_space<vmem>>, vector<64x128xf32>
    %c0_1 = arith.constant 0 : index
    %c0_2 = arith.constant 0 : index
    %1 = vector.load %arg2[%c0_1, %c0_2] : memref<4x128xf32, #tpu.memory_space<vmem>>, vector<4x128xf32>
    %c0_3 = arith.constant 0 : index
    %c0_4 = arith.constant 0 : index
    %c0_5 = arith.constant 0 : index
    %2 = vector.load %arg1[%c0_3, %c0_4, %c0_5] : memref<3x128x128xf32, #tpu.memory_space<vmem>>, vector<1x128x128xf32>
    %3 = vector.shape_cast %2 : vector<1x128x128xf32> to vector<128x128xf32>
    %cst = arith.constant dense<0.000000e+00> : vector<64x128xf32>
    %4 = tpu.matmul %0, %3, %cst {dimension_numbers = #tpu.dot_dimension_numbers<[1], [0], [0], [1], [0, 0, 1, 1], [], []>} : vector<64x128xf32>, vector<128x128xf32>, vector<64x128xf32> -> vector<64x128xf32>
    %5 = vector.extract_strided_slice %1 {offsets = [0, 0], sizes = [1, 128], strides = [1, 1]} : vector<4x128xf32> to vector<1x128xf32>
    %6 = vector.extract_strided_slice %1 {offsets = [1, 0], sizes = [1, 128], strides = [1, 1]} : vector<4x128xf32> to vector<1x128xf32>
    %cst_6 = arith.constant dense<0.000000e+00> : vector<128xf32>
    %7 = vector.multi_reduction <add>, %4, %cst_6 [0] : vector<64x128xf32> to vector<128xf32>
    %8 = vector.shape_cast %7 : vector<128xf32> to vector<1x128xf32>
    %9 = arith.mulf %4, %4 : vector<64x128xf32>
    %cst_7 = arith.constant dense<0.000000e+00> : vector<128xf32>
    %10 = vector.multi_reduction <add>, %9, %cst_7 [0] : vector<64x128xf32> to vector<128xf32>
    %11 = vector.shape_cast %10 : vector<128xf32> to vector<1x128xf32>
    %cst_8 = arith.constant 1.562500e-02 : f32
    %12 = vector.broadcast %cst_8 : f32 to vector<1x128xf32>
    %13 = arith.mulf %8, %12 : vector<1x128xf32>
    %cst_9 = arith.constant 1.562500e-02 : f32
    %14 = vector.broadcast %cst_9 : f32 to vector<1x128xf32>
    %15 = arith.mulf %11, %14 : vector<1x128xf32>
    %16 = arith.mulf %13, %13 : vector<1x128xf32>
    %17 = arith.subf %15, %16 : vector<1x128xf32>
    %cst_10 = arith.constant 0.000000e+00 : f32
    %18 = vector.broadcast %cst_10 : f32 to vector<1x128xf32>
    %19 = arith.maximumf %17, %18 : vector<1x128xf32>
    %cst_11 = arith.constant 9.99999993E-9 : f32
    %20 = vector.broadcast %cst_11 : f32 to vector<1x128xf32>
    %21 = arith.addf %19, %20 : vector<1x128xf32>
    %22 = math.rsqrt %21 : vector<1x128xf32>
    %23 = arith.mulf %5, %22 : vector<1x128xf32>
    %24 = arith.mulf %13, %23 : vector<1x128xf32>
    %25 = arith.subf %6, %24 : vector<1x128xf32>
    %26 = vector.broadcast %23 : vector<1x128xf32> to vector<64x128xf32>
    %27 = arith.mulf %4, %26 : vector<64x128xf32>
    %28 = vector.broadcast %25 : vector<1x128xf32> to vector<64x128xf32>
    %29 = arith.addf %27, %28 : vector<64x128xf32>
    %30 = arith.negf %29 : vector<64x128xf32>
    %31 = math.exp %30 : vector<64x128xf32>
    %cst_12 = arith.constant 1.000000e+00 : f32
    %32 = vector.broadcast %cst_12 : f32 to vector<64x128xf32>
    %33 = arith.addf %32, %31 : vector<64x128xf32>
    %34 = arith.divf %32, %33 : vector<64x128xf32>
    %35 = arith.mulf %29, %34 : vector<64x128xf32>
    %c1 = arith.constant 1 : index
    %c0_13 = arith.constant 0 : index
    %c0_14 = arith.constant 0 : index
    %36 = vector.load %arg1[%c1, %c0_13, %c0_14] : memref<3x128x128xf32, #tpu.memory_space<vmem>>, vector<1x128x128xf32>
    %37 = vector.shape_cast %36 : vector<1x128x128xf32> to vector<128x128xf32>
    %cst_15 = arith.constant dense<0.000000e+00> : vector<64x128xf32>
    %38 = tpu.matmul %35, %37, %cst_15 {dimension_numbers = #tpu.dot_dimension_numbers<[1], [0], [0], [1], [0, 0, 1, 1], [], []>} : vector<64x128xf32>, vector<128x128xf32>, vector<64x128xf32> -> vector<64x128xf32>
    %39 = vector.extract_strided_slice %1 {offsets = [2, 0], sizes = [1, 128], strides = [1, 1]} : vector<4x128xf32> to vector<1x128xf32>
    %40 = vector.extract_strided_slice %1 {offsets = [3, 0], sizes = [1, 128], strides = [1, 1]} : vector<4x128xf32> to vector<1x128xf32>
    %cst_16 = arith.constant dense<0.000000e+00> : vector<128xf32>
    %41 = vector.multi_reduction <add>, %38, %cst_16 [0] : vector<64x128xf32> to vector<128xf32>
    %42 = vector.shape_cast %41 : vector<128xf32> to vector<1x128xf32>
    %43 = arith.mulf %38, %38 : vector<64x128xf32>
    %cst_17 = arith.constant dense<0.000000e+00> : vector<128xf32>
    %44 = vector.multi_reduction <add>, %43, %cst_17 [0] : vector<64x128xf32> to vector<128xf32>
    %45 = vector.shape_cast %44 : vector<128xf32> to vector<1x128xf32>
    %cst_18 = arith.constant 1.562500e-02 : f32
    %46 = vector.broadcast %cst_18 : f32 to vector<1x128xf32>
    %47 = arith.mulf %42, %46 : vector<1x128xf32>
    %cst_19 = arith.constant 1.562500e-02 : f32
    %48 = vector.broadcast %cst_19 : f32 to vector<1x128xf32>
    %49 = arith.mulf %45, %48 : vector<1x128xf32>
    %50 = arith.mulf %47, %47 : vector<1x128xf32>
    %51 = arith.subf %49, %50 : vector<1x128xf32>
    %cst_20 = arith.constant 0.000000e+00 : f32
    %52 = vector.broadcast %cst_20 : f32 to vector<1x128xf32>
    %53 = arith.maximumf %51, %52 : vector<1x128xf32>
    %cst_21 = arith.constant 9.99999993E-9 : f32
    %54 = vector.broadcast %cst_21 : f32 to vector<1x128xf32>
    %55 = arith.addf %53, %54 : vector<1x128xf32>
    %56 = math.rsqrt %55 : vector<1x128xf32>
    %57 = arith.mulf %39, %56 : vector<1x128xf32>
    %58 = arith.mulf %47, %57 : vector<1x128xf32>
    %59 = arith.subf %40, %58 : vector<1x128xf32>
    %60 = vector.broadcast %57 : vector<1x128xf32> to vector<64x128xf32>
    %61 = arith.mulf %38, %60 : vector<64x128xf32>
    %62 = vector.broadcast %59 : vector<1x128xf32> to vector<64x128xf32>
    %63 = arith.addf %61, %62 : vector<64x128xf32>
    %64 = arith.negf %63 : vector<64x128xf32>
    %65 = math.exp %64 : vector<64x128xf32>
    %cst_22 = arith.constant 1.000000e+00 : f32
    %66 = vector.broadcast %cst_22 : f32 to vector<64x128xf32>
    %67 = arith.addf %66, %65 : vector<64x128xf32>
    %68 = arith.divf %66, %67 : vector<64x128xf32>
    %69 = arith.mulf %63, %68 : vector<64x128xf32>
    %c2 = arith.constant 2 : index
    %c0_23 = arith.constant 0 : index
    %c0_24 = arith.constant 0 : index
    %70 = vector.load %arg1[%c2, %c0_23, %c0_24] : memref<3x128x128xf32, #tpu.memory_space<vmem>>, vector<1x128x128xf32>
    %71 = vector.shape_cast %70 : vector<1x128x128xf32> to vector<128x128xf32>
    %cst_25 = arith.constant dense<0.000000e+00> : vector<64x128xf32>
    %72 = tpu.matmul %69, %71, %cst_25 {dimension_numbers = #tpu.dot_dimension_numbers<[1], [0], [0], [1], [0, 0, 1, 1], [], []>} : vector<64x128xf32>, vector<128x128xf32>, vector<64x128xf32> -> vector<64x128xf32>
    %c0_26 = arith.constant 0 : index
    %c0_27 = arith.constant 0 : index
    %73 = vector.load %arg3[%c0_26, %c0_27] : memref<64x256xf32, #tpu.memory_space<vmem>>, vector<64x128xf32>
    tpu.vector_store %arg3[%c0_26, %c0_27], %72 {strides = array<i32>} : memref<64x256xf32, #tpu.memory_space<vmem>>, vector<64x128xf32>,
    %c0_28 = arith.constant 0 : index
    %c128 = arith.constant 128 : index
    %74 = vector.load %arg3[%c0_28, %c128] : memref<64x256xf32, #tpu.memory_space<vmem>>, vector<64x128xf32>
    tpu.vector_store %arg3[%c0_28, %c128], %69 {strides = array<i32>} : memref<64x256xf32, #tpu.memory_space<vmem>>, vector<64x128xf32>,
    return
  }
}

</mosaic_0001>

<llo_original>
// kernel: mlp_forward.1
$region0: #{mlp_forward.1}
  #allocation0 [shape = 'u32[]', space=smem, size = 0x4, offset = 0x4, fixed_abs, tag = 'smem constant byte address 0x4 - core index']
  #allocation1 [shape = 'u32[72,128]{1,0:T(1,128)}', space=vmem, size = 0x9000, scoped, tag = 'internal scratch']
  %s0 = inlined_call_operand.vmem [shape: f32[64,128], index: 0, kind: input, shape index: {}]
  %s1 = inlined_call_operand.hbm [shape: f32[3,128,128], index: 1, kind: input, shape index: {}]
  %s2 = inlined_call_operand.vmem [shape: f32[4,128], index: 2, kind: input, shape index: {}]
  %s3 = inlined_call_operand.vmem [shape: f32[64,256], index: 3, kind: output, shape index: {}]
  %s4 = sld [smem:[#allocation0]]
  $region26: #{mlp_forward.1} parent=0
    _
  %s6 = ssub.s32 1, %s4
  %s7 = scalar_select 0, %s6, %s4
  $region1: #{mlp_forward.1} parent=0
    #allocation2 [shape = 'u8[196608]{0}', space=vmem, size = 0x30000, scoped, tag = 'input window, operand 1, single buffered']
    #allocation3 [shape = 's32[1]{0}', space=sflag, size = 0x4, scoped, tag = 'scoped memory for mlp_forward.1']
    %8 = vsyncpa [#allocation3], 0
    // Predicated region
    $region2: #{mlp_forward.1} parent=1 // pred_check
      _
    $region3: #{mlp_forward.1} parent=1 // pred_check_branch
      %10 = sbr.rel (0) target = $region5
    $region4: #{mlp_forward.1} parent=1 // pred_region
      _
    $region5: #{mlp_forward.1} parent=1 // pred_fallthru
      _
    // Predicated region
    $region6: #{mlp_forward.1} parent=1 // pred_check
      _
    $region7: #{mlp_forward.1} parent=1 // pred_check_branch
      %12 = sbr.rel (0) target = $region9
    $region8: #{mlp_forward.1} parent=1 // pred_region
      %14 = vsyncadd [#allocation3], 0
      %s15 = sshll.u32 %s1, 4
      %s16 = int_to_ptr.hbm [resolvable:$true] %s15
      %s17 = sshll.u32 [#allocation2], 4
      %s18 = int_to_ptr.vmem [resolvable:$true] %s17
      %23 = dma.hbm_to_vmem [thread:$0]  %s16, 6144, %s18, [#allocation3], 128, 128, 8
    $region9: #{mlp_forward.1} parent=1 // pred_fallthru
      _
    // Predicated region
    $region10: #{mlp_forward.1} parent=1 // pred_check
      _
    $region11: #{mlp_forward.1} parent=1 // pred_check_branch
      %25 = sbr.rel (0) target = $region13
    $region12: #{mlp_forward.1} parent=1 // pred_region
      _
    $region13: #{mlp_forward.1} parent=1 // pred_fallthru
      _
    // Predicated region
    $region14: #{mlp_forward.1} parent=1 // pred_check
      _
    $region15: #{mlp_forward.1} parent=1 // pred_check_branch
      %27 = sbr.rel (0) target = $region17
    $region16: #{mlp_forward.1} parent=1 // pred_region
      %29 = dma.done [#allocation3], 6144
    $region17: #{mlp_forward.1} parent=1 // pred_fallthru
      _
    %v30 = vld [vmem:[%s0] sm:$0xff]
    %v31 = vld [vmem:[%s0 + $0x8] sm:$0xff]
    %v32 = vld [vmem:[%s0 + $0x10] sm:$0xff]
    %v33 = vld [vmem:[%s0 + $0x18] sm:$0xff]
    %v34 = vld [vmem:[%s0 + $0x20] sm:$0xff]
    %v35 = vld [vmem:[%s0 + $0x28] sm:$0xff]
    %v36 = vld [vmem:[%s0 + $0x30] sm:$0xff]
    %v37 = vld [vmem:[%s0 + $0x38] sm:$0xff]
    %v38 = vld [vmem:[%s2] sm:$0xf]
    %v39 = vld [vmem:[#allocation2] sm:$0xff]
    %v40 = vld [vmem:[#allocation2 + $0x8] sm:$0xff]
    %v41 = vld [vmem:[#allocation2 + $0x10] sm:$0xff]
    %v42 = vld [vmem:[#allocation2 + $0x18] sm:$0xff]
    %v43 = vld [vmem:[#allocation2 + $0x20] sm:$0xff]
    %v44 = vld [vmem:[#allocation2 + $0x28] sm:$0xff]
    %v45 = vld [vmem:[#allocation2 + $0x30] sm:$0xff]
    %v46 = vld [vmem:[#allocation2 + $0x38] sm:$0xff]
    %v47 = vld [vmem:[#allocation2 + $0x40] sm:$0xff]
    %v48 = vld [vmem:[#allocation2 + $0x48] sm:$0xff]
    %v49 = vld [vmem:[#allocation2 + $0x50] sm:$0xff]
    %v50 = vld [vmem:[#allocation2 + $0x58] sm:$0xff]
    %v51 = vld [vmem:[#allocation2 + $0x60] sm:$0xff]
    %v52 = vld [vmem:[#allocation2 + $0x68] sm:$0xff]
    %v53 = vld [vmem:[#allocation2 + $0x70] sm:$0xff]
    %v54 = vld [vmem:[#allocation2 + $0x78] sm:$0xff]
    %55 = vmatpush.msra.mxu0 %v54
    %56 = vmatpush.msra.mxu0 %v53
    %57 = vmatpush.msra.mxu0 %v52
    %58 = vmatpush.msra.mxu0 %v51
    %59 = vmatpush.msra.mxu0 %v50
    %60 = vmatpush.msra.mxu0 %v49
    %61 = vmatpush.msra.mxu0 %v48
    %62 = vmatpush.msra.mxu0 %v47
    %63 = vmatpush.msra.mxu0 %v46
    %64 = vmatpush.msra.mxu0 %v45
    %65 = vmatpush.msra.mxu0 %v44
    %66 = vmatpush.msra.mxu0 %v43
    %67 = vmatpush.msra.mxu0 %v42
    %68 = vmatpush.msra.mxu0 %v41
    %69 = vmatpush.msra.mxu0 %v40
    %70 = vmatpush.msra.mxu0 %v39
    %71 = vmatmul.f32.gmra.mxu0 %v30
    %v72 = vpop.f32.mrf.mxu0
    %v73 = vadd.f32 0.0, %v72
    %74 = vmatmul.f32.gmra.mxu0 %v31
    %v75 = vpop.f32.mrf.mxu0
    %v76 = vadd.f32 0.0, %v75
    %77 = vmatmul.f32.gmra.mxu0 %v32
    %v78 = vpop.f32.mrf.mxu0
    %v79 = vadd.f32 0.0, %v78
    %80 = vmatmul.f32.gmra.mxu0 %v33
    %v81 = vpop.f32.mrf.mxu0
    %v82 = vadd.f32 0.0, %v81
    %83 = vmatmul.f32.gmra.mxu0 %v34
    %v84 = vpop.f32.mrf.mxu0
    %v85 = vadd.f32 0.0, %v84
    %86 = vmatmul.f32.gmra.mxu0 %v35
    %v87 = vpop.f32.mrf.mxu0
    %v88 = vadd.f32 0.0, %v87
    %89 = vmatmul.f32.gmra.mxu0 %v36
    %v90 = vpop.f32.mrf.mxu0
    %v91 = vadd.f32 0.0, %v90
    %92 = vmatmul.f32.gmra.mxu0 %v37
    %v93 = vpop.f32.mrf.mxu0
    %v94 = vadd.f32 0.0, %v93
    %95 = vdwg.mxu0
    %v96 = vadd.f32 %v73, %v76
    %v97 = vadd.f32 %v96, %v79
    %v98 = vadd.f32 %v97, %v82
    %v99 = vadd.f32 %v98, %v85
    %v100 = vadd.f32 %v99, %v88
    %v101 = vadd.f32 %v100, %v91
    %v102 = vadd.f32 %v101, %v94
    %v103 = vrot.slane %v102, 4
    %v104 = vadd.f32 %v102, %v103
    %v105 = vrot.slane %v104, 2
    %v106 = vadd.f32 %v104, %v105
    %v107 = vrot.slane %v106, 1
    %v108 = vadd.f32 %v106, %v107
    %v109 = vmul.f32 %v73, %v73
    %v110 = vmul.f32 %v76, %v76
    %v111 = vmul.f32 %v79, %v79
    %v112 = vmul.f32 %v82, %v82
    %v113 = vmul.f32 %v85, %v85
    %v114 = vmul.f32 %v88, %v88
    %v115 = vmul.f32 %v91, %v91
    %v116 = vmul.f32 %v94, %v94
    %v117 = vadd.f32 %v109, %v110
    %v118 = vadd.f32 %v117, %v111
    %v119 = vadd.f32 %v118, %v112
    %v120 = vadd.f32 %v119, %v113
    %v121 = vadd.f32 %v120, %v114
    %v122 = vadd.f32 %v121, %v115
    %v123 = vadd.f32 %v122, %v116
    %v124 = vrot.slane %v123, 4
    %v125 = vadd.f32 %v123, %v124
    %v126 = vrot.slane %v125, 2
    %v127 = vadd.f32 %v125, %v126
    %v128 = vrot.slane %v127, 1
    %v129 = vadd.f32 %v127, %v128
    %v130 = vmul.f32 %v108, 0.015625
    %v131 = vmul.f32 %v129, 0.015625
    %v132 = vmul.f32 %v130, %v130
    %v133 = vsub.f32 %v131, %v132
    %v134 = vmax.f32 %v133, 0.0
    %v135 = vadd.f32 %v134, 1e-08
    %v136 = vrsqrt.pop %v135
    %v137 = vmul.f32 %v136, %v135
    %v138 = vmul.f32 %v137, %v136
    %v139 = vmul.f32 0.5, %v138
    %v140 = vsub.f32 1.5, %v139
    %v141 = vmul.f32 %v136, %v140
    %vm142 = vweird.f32 %v135
    %vm143 = vweird.f32 %v136
    %vm144 = vmor %vm142, %vm143
    %v145 = vsel %vm144, %v136, %v141
    %v146 = vmul.f32 %v38, %v145
    %v147 = vmul.f32 %v130, %v146
    %v149 = vrot.slane %v147, 7
    %v151 = vsub.f32 %v38, %v149
    %v152 = vperm.slane %v146, 0
    %v153 = vmul.f32 %v73, %v152
    %v154 = vmul.f32 %v76, %v152
    %v155 = vmul.f32 %v79, %v152
    %v156 = vmul.f32 %v82, %v152
    %v157 = vmul.f32 %v85, %v152
    %v158 = vmul.f32 %v88, %v152
    %v159 = vmul.f32 %v91, %v152
    %v160 = vmul.f32 %v94, %v152
    %v161 = vperm.slane %v151, 1
    %v162 = vadd.f32 %v153, %v161
    %v163 = vadd.f32 %v154, %v161
    %v164 = vadd.f32 %v155, %v161
    %v165 = vadd.f32 %v156, %v161
    %v166 = vadd.f32 %v157, %v161
    %v167 = vadd.f32 %v158, %v161
    %v168 = vadd.f32 %v159, %v161
    %v169 = vadd.f32 %v160, %v161
    %v170 = vxor.u32 %v162, 2147483648
    %v171 = vxor.u32 %v163, 2147483648
    %v172 = vxor.u32 %v164, 2147483648
    %v173 = vxor.u32 %v165, 2147483648
    %v174 = vxor.u32 %v166, 2147483648
    %v175 = vxor.u32 %v167, 2147483648
    %v176 = vxor.u32 %v168, 2147483648
    %v177 = vxor.u32 %v169, 2147483648
    %v178 = vmul.f32 %v170, 1.442695
    %v179 = vpow.pop %v178
    %v180 = vmul.f32 %v171, 1.442695
    %v181 = vpow.pop %v180
    %v182 = vmul.f32 %v172, 1.442695
    %v183 = vpow.pop %v182
    %v184 = vmul.f32 %v173, 1.442695
    %v185 = vpow.pop %v184
    %v186 = vmul.f32 %v174, 1.442695
    %v187 = vpow.pop %v186
    %v188 = vmul.f32 %v175, 1.442695
    %v189 = vpow.pop %v188
    %v190 = vmul.f32 %v176, 1.442695
    %v191 = vpow.pop %v190
    %v192 = vmul.f32 %v177, 1.442695
    %v193 = vpow.pop %v192
    %v194 = vadd.f32 %v179, 1.0
    %v195 = vadd.f32 %v181, 1.0
    %v196 = vadd.f32 %v183, 1.0
    %v197 = vadd.f32 %v185, 1.0
    %v198 = vadd.f32 %v187, 1.0
    %v199 = vadd.f32 %v189, 1.0
    %v200 = vadd.f32 %v191, 1.0
    %v201 = vadd.f32 %v193, 1.0
    %v202 = vrcp.pop %v194
    %v203 = vmul.f32 %v194, %v202
    %v204 = vsub.f32 1.0, %v203
    %v205 = vmul.f32 %v202, %v204
    %v206 = vadd.f32 %v202, %v205
    %vm207 = vweird.f32 %v194
    %vm208 = vweird.f32 %v202
    %vm209 = vmor %vm207, %vm208
    %v210 = vsel %vm209, %v202, %v206
    %v211 = vand.u32 2147483647, %v194
    %vm212 = vcmp.eq.f32.partialorder %v211, 8.507059e+37
    %v213 = vand.u32 %v194, 2147483648
    %v214 = vor.u32 1.1754944e-38, %v213
    %v215 = vsel %vm212, %v214, %v210
    %v216 = vmul.f32 1.0, %v215
    %v217 = vrcp.pop %v195
    %v218 = vmul.f32 %v195, %v217
    %v219 = vsub.f32 1.0, %v218
    %v220 = vmul.f32 %v217, %v219
    %v221 = vadd.f32 %v217, %v220
    %vm222 = vweird.f32 %v195
    %vm223 = vweird.f32 %v217
    %vm224 = vmor %vm222, %vm223
    %v225 = vsel %vm224, %v217, %v221
    %v226 = vand.u32 2147483647, %v195
    %vm227 = vcmp.eq.f32.partialorder %v226, 8.507059e+37
    %v228 = vand.u32 %v195, 2147483648
    %v229 = vor.u32 1.1754944e-38, %v228
    %v230 = vsel %vm227, %v229, %v225
    %v231 = vmul.f32 1.0, %v230
    %v232 = vrcp.pop %v196
    %v233 = vmul.f32 %v196, %v232
    %v234 = vsub.f32 1.0, %v233
    %v235 = vmul.f32 %v232, %v234
    %v236 = vadd.f32 %v232, %v235
    %vm237 = vweird.f32 %v196
    %vm238 = vweird.f32 %v232
    %vm239 = vmor %vm237, %vm238
    %v240 = vsel %vm239, %v232, %v236
    %v241 = vand.u32 2147483647, %v196
    %vm242 = vcmp.eq.f32.partialorder %v241, 8.507059e+37
    %v243 = vand.u32 %v196, 2147483648
    %v244 = vor.u32 1.1754944e-38, %v243
    %v245 = vsel %vm242, %v244, %v240
    %v246 = vmul.f32 1.0, %v245
    %v247 = vrcp.pop %v197
    %v248 = vmul.f32 %v197, %v247
    %v249 = vsub.f32 1.0, %v248
    %v250 = vmul.f32 %v247, %v249
    %v251 = vadd.f32 %v247, %v250
    %vm252 = vweird.f32 %v197
    %vm253 = vweird.f32 %v247
    %vm254 = vmor %vm252, %vm253
    %v255 = vsel %vm254, %v247, %v251
    %v256 = vand.u32 2147483647, %v197
    %vm257 = vcmp.eq.f32.partialorder %v256, 8.507059e+37
    %v258 = vand.u32 %v197, 2147483648
    %v259 = vor.u32 1.1754944e-38, %v258
    %v260 = vsel %vm257, %v259, %v255
    %v261 = vmul.f32 1.0, %v260
    %v262 = vrcp.pop %v198
    %v263 = vmul.f32 %v198, %v262
    %v264 = vsub.f32 1.0, %v263
    %v265 = vmul.f32 %v262, %v264
    %v266 = vadd.f32 %v262, %v265
    %vm267 = vweird.f32 %v198
    %vm268 = vweird.f32 %v262
    %vm269 = vmor %vm267, %vm268
    %v270 = vsel %vm269, %v262, %v266
    %v271 = vand.u32 2147483647, %v198
    %vm272 = vcmp.eq.f32.partialorder %v271, 8.507059e+37
    %v273 = vand.u32 %v198, 2147483648
    %v274 = vor.u32 1.1754944e-38, %v273
    %v275 = vsel %vm272, %v274, %v270
    %v276 = vmul.f32 1.0, %v275
    %v277 = vrcp.pop %v199
    %v278 = vmul.f32 %v199, %v277
    %v279 = vsub.f32 1.0, %v278
    %v280 = vmul.f32 %v277, %v279
    %v281 = vadd.f32 %v277, %v280
    %vm282 = vweird.f32 %v199
    %vm283 = vweird.f32 %v277
    %vm284 = vmor %vm282, %vm283
    %v285 = vsel %vm284, %v277, %v281
    %v286 = vand.u32 2147483647, %v199
    %vm287 = vcmp.eq.f32.partialorder %v286, 8.507059e+37
    %v288 = vand.u32 %v199, 2147483648
    %v289 = vor.u32 1.1754944e-38, %v288
    %v290 = vsel %vm287, %v289, %v285
    %v291 = vmul.f32 1.0, %v290
    %v292 = vrcp.pop %v200
    %v293 = vmul.f32 %v200, %v292
    %v294 = vsub.f32 1.0, %v293
    %v295 = vmul.f32 %v292, %v294
    %v296 = vadd.f32 %v292, %v295
    %vm297 = vweird.f32 %v200
    %vm298 = vweird.f32 %v292
    %vm299 = vmor %vm297, %vm298
    %v300 = vsel %vm299, %v292, %v296
    %v301 = vand.u32 2147483647, %v200
    %vm302 = vcmp.eq.f32.partialorder %v301, 8.507059e+37
    %v303 = vand.u32 %v200, 2147483648
    %v304 = vor.u32 1.1754944e-38, %v303
    %v305 = vsel %vm302, %v304, %v300
    %v306 = vmul.f32 1.0, %v305
    %v307 = vrcp.pop %v201
    %v308 = vmul.f32 %v201, %v307
    %v309 = vsub.f32 1.0, %v308
    %v310 = vmul.f32 %v307, %v309
    %v311 = vadd.f32 %v307, %v310
    %vm312 = vweird.f32 %v201
    %vm313 = vweird.f32 %v307
    %vm314 = vmor %vm312, %vm313
    %v315 = vsel %vm314, %v307, %v311
    %v316 = vand.u32 2147483647, %v201
    %vm317 = vcmp.eq.f32.partialorder %v316, 8.507059e+37
    %v318 = vand.u32 %v201, 2147483648
    %v319 = vor.u32 1.1754944e-38, %v318
    %v320 = vsel %vm317, %v319, %v315
    %v321 = vmul.f32 1.0, %v320
    %v322 = vmul.f32 %v162, %v216
    %v323 = vmul.f32 %v163, %v231
    %v324 = vmul.f32 %v164, %v246
    %v325 = vmul.f32 %v165, %v261
    %v326 = vmul.f32 %v166, %v276
    %v327 = vmul.f32 %v167, %v291
    %v328 = vmul.f32 %v168, %v306
    %v329 = vmul.f32 %v169, %v321
    %s330 = scalar_lea.vmem [#allocation2], 128
    %v331 = vld [vmem:[%s330] sm:$0xff]
    %v332 = vld [vmem:[%s330 + $0x8] sm:$0xff]
    %v333 = vld [vmem:[%s330 + $0x10] sm:$0xff]
    %v334 = vld [vmem:[%s330 + $0x18] sm:$0xff]
    %v335 = vld [vmem:[%s330 + $0x20] sm:$0xff]
    %v336 = vld [vmem:[%s330 + $0x28] sm:$0xff]
    %v337 = vld [vmem:[%s330 + $0x30] sm:$0xff]
    %v338 = vld [vmem:[%s330 + $0x38] sm:$0xff]
    %v339 = vld [vmem:[%s330 + $0x40] sm:$0xff]
    %v340 = vld [vmem:[%s330 + $0x48] sm:$0xff]
    %v341 = vld [vmem:[%s330 + $0x50] sm:$0xff]
    %v342 = vld [vmem:[%s330 + $0x58] sm:$0xff]
    %v343 = vld [vmem:[%s330 + $0x60] sm:$0xff]
    %v344 = vld [vmem:[%s330 + $0x68] sm:$0xff]
    %v345 = vld [vmem:[%s330 + $0x70] sm:$0xff]
    %v346 = vld [vmem:[%s330 + $0x78] sm:$0xff]
    %347 = vmatpush.msra.mxu0 %v346
    %348 = vmatpush.msra.mxu0 %v345
    %349 = vmatpush.msra.mxu0 %v344
    %350 = vmatpush.msra.mxu0 %v343
    %351 = vmatpush.msra.mxu0 %v342
    %352 = vmatpush.msra.mxu0 %v341
    %353 = vmatpush.msra.mxu0 %v340
    %354 = vmatpush.msra.mxu0 %v339
    %355 = vmatpush.msra.mxu0 %v338
    %356 = vmatpush.msra.mxu0 %v337
    %357 = vmatpush.msra.mxu0 %v336
    %358 = vmatpush.msra.mxu0 %v335
    %359 = vmatpush.msra.mxu0 %v334
    %360 = vmatpush.msra.mxu0 %v333
    %361 = vmatpush.msra.mxu0 %v332
    %362 = vmatpush.msra.mxu0 %v331
    %363 = vmatmul.f32.gmra.mxu0 %v322
    %v364 = vpop.f32.mrf.mxu0
    %v365 = vadd.f32 0.0, %v364
    %366 = vmatmul.f32.gmra.mxu0 %v323
    %v367 = vpop.f32.mrf.mxu0
    %v368 = vadd.f32 0.0, %v367
    %369 = vmatmul.f32.gmra.mxu0 %v324
    %v370 = vpop.f32.mrf.mxu0
    %v371 = vadd.f32 0.0, %v370
    %372 = vmatmul.f32.gmra.mxu0 %v325
    %v373 = vpop.f32.mrf.mxu0
    %v374 = vadd.f32 0.0, %v373
    %375 = vmatmul.f32.gmra.mxu0 %v326
    %v376 = vpop.f32.mrf.mxu0
    %v377 = vadd.f32 0.0, %v376
    %378 = vmatmul.f32.gmra.mxu0 %v327
    %v379 = vpop.f32.mrf.mxu0
    %v380 = vadd.f32 0.0, %v379
    %381 = vmatmul.f32.gmra.mxu0 %v328
    %v382 = vpop.f32.mrf.mxu0
    %v383 = vadd.f32 0.0, %v382
    %384 = vmatmul.f32.gmra.mxu0 %v329
    %v385 = vpop.f32.mrf.mxu0
    %v386 = vadd.f32 0.0, %v385
    %387 = vdwg.mxu0
    %v388 = vadd.f32 %v365, %v368
    %v389 = vadd.f32 %v388, %v371
    %v390 = vadd.f32 %v389, %v374
    %v391 = vadd.f32 %v390, %v377
    %v392 = vadd.f32 %v391, %v380
    %v393 = vadd.f32 %v392, %v383
    %v394 = vadd.f32 %v393, %v386
    %v395 = vrot.slane %v394, 4
    %v396 = vadd.f32 %v394, %v395
    %v397 = vrot.slane %v396, 2
    %v398 = vadd.f32 %v396, %v397
    %v399 = vrot.slane %v398, 1
    %v400 = vadd.f32 %v398, %v399
    %v401 = vmul.f32 %v365, %v365
    %v402 = vmul.f32 %v368, %v368
    %v403 = vmul.f32 %v371, %v371
    %v404 = vmul.f32 %v374, %v374
    %v405 = vmul.f32 %v377, %v377
    %v406 = vmul.f32 %v380, %v380
    %v407 = vmul.f32 %v383, %v383
    %v408 = vmul.f32 %v386, %v386
    %v409 = vadd.f32 %v401, %v402
    %v410 = vadd.f32 %v409, %v403
    %v411 = vadd.f32 %v410, %v404
    %v412 = vadd.f32 %v411, %v405
    %v413 = vadd.f32 %v412, %v406
    %v414 = vadd.f32 %v413, %v407
    %v415 = vadd.f32 %v414, %v408
    %v416 = vrot.slane %v415, 4
    %v417 = vadd.f32 %v415, %v416
    %v418 = vrot.slane %v417, 2
    %v419 = vadd.f32 %v417, %v418
    %v420 = vrot.slane %v419, 1
    %v421 = vadd.f32 %v419, %v420
    %v422 = vmul.f32 %v400, 0.015625
    %v423 = vmul.f32 %v421, 0.015625
    %v424 = vmul.f32 %v422, %v422
    %v425 = vsub.f32 %v423, %v424
    %v426 = vmax.f32 %v425, 0.0
    %v427 = vadd.f32 %v426, 1e-08
    %v428 = vrsqrt.pop %v427
    %v429 = vmul.f32 %v428, %v427
    %v430 = vmul.f32 %v429, %v428
    %v431 = vmul.f32 0.5, %v430
    %v432 = vsub.f32 1.5, %v431
    %v433 = vmul.f32 %v428, %v432
    %vm434 = vweird.f32 %v427
    %vm435 = vweird.f32 %v428
    %vm436 = vmor %vm434, %vm435
    %v437 = vsel %vm436, %v428, %v433
    %v438 = vmul.f32 %v38, %v437
    %v439 = vmul.f32 %v422, %v438
    %v441 = vrot.slane %v439, 7
    %v443 = vsub.f32 %v38, %v441
    %v444 = vperm.slane %v438, 2
    %v445 = vmul.f32 %v365, %v444
    %v446 = vmul.f32 %v368, %v444
    %v447 = vmul.f32 %v371, %v444
    %v448 = vmul.f32 %v374, %v444
    %v449 = vmul.f32 %v377, %v444
    %v450 = vmul.f32 %v380, %v444
    %v451 = vmul.f32 %v383, %v444
    %v452 = vmul.f32 %v386, %v444
    %v453 = vperm.slane %v443, 3
    %v454 = vadd.f32 %v445, %v453
    %v455 = vadd.f32 %v446, %v453
    %v456 = vadd.f32 %v447, %v453
    %v457 = vadd.f32 %v448, %v453
    %v458 = vadd.f32 %v449, %v453
    %v459 = vadd.f32 %v450, %v453
    %v460 = vadd.f32 %v451, %v453
    %v461 = vadd.f32 %v452, %v453
    %v462 = vxor.u32 %v454, 2147483648
    %v463 = vxor.u32 %v455, 2147483648
    %v464 = vxor.u32 %v456, 2147483648
    %v465 = vxor.u32 %v457, 2147483648
    %v466 = vxor.u32 %v458, 2147483648
    %v467 = vxor.u32 %v459, 2147483648
    %v468 = vxor.u32 %v460, 2147483648
    %v469 = vxor.u32 %v461, 2147483648
    %v470 = vmul.f32 %v462, 1.442695
    %v471 = vpow.pop %v470
    %v472 = vmul.f32 %v463, 1.442695
    %v473 = vpow.pop %v472
    %v474 = vmul.f32 %v464, 1.442695
    %v475 = vpow.pop %v474
    %v476 = vmul.f32 %v465, 1.442695
    %v477 = vpow.pop %v476
    %v478 = vmul.f32 %v466, 1.442695
    %v479 = vpow.pop %v478
    %v480 = vmul.f32 %v467, 1.442695
    %v481 = vpow.pop %v480
    %v482 = vmul.f32 %v468, 1.442695
    %v483 = vpow.pop %v482
    %v484 = vmul.f32 %v469, 1.442695
    %v485 = vpow.pop %v484
    %v486 = vadd.f32 %v471, 1.0
    %v487 = vadd.f32 %v473, 1.0
    %v488 = vadd.f32 %v475, 1.0
    %v489 = vadd.f32 %v477, 1.0
    %v490 = vadd.f32 %v479, 1.0
    %v491 = vadd.f32 %v481, 1.0
    %v492 = vadd.f32 %v483, 1.0
    %v493 = vadd.f32 %v485, 1.0
    %v494 = vrcp.pop %v486
    %v495 = vmul.f32 %v486, %v494
    %v496 = vsub.f32 1.0, %v495
    %v497 = vmul.f32 %v494, %v496
    %v498 = vadd.f32 %v494, %v497
    %vm499 = vweird.f32 %v486
    %vm500 = vweird.f32 %v494
    %vm501 = vmor %vm499, %vm500
    %v502 = vsel %vm501, %v494, %v498
    %v503 = vand.u32 2147483647, %v486
    %vm504 = vcmp.eq.f32.partialorder %v503, 8.507059e+37
    %v505 = vand.u32 %v486, 2147483648
    %v506 = vor.u32 1.1754944e-38, %v505
    %v507 = vsel %vm504, %v506, %v502
    %v508 = vmul.f32 1.0, %v507
    %v509 = vrcp.pop %v487
    %v510 = vmul.f32 %v487, %v509
    %v511 = vsub.f32 1.0, %v510
    %v512 = vmul.f32 %v509, %v511
    %v513 = vadd.f32 %v509, %v512
    %vm514 = vweird.f32 %v487
    %vm515 = vweird.f32 %v509
    %vm516 = vmor %vm514, %vm515
    %v517 = vsel %vm516, %v509, %v513
    %v518 = vand.u32 2147483647, %v487
    %vm519 = vcmp.eq.f32.partialorder %v518, 8.507059e+37
    %v520 = vand.u32 %v487, 2147483648
    %v521 = vor.u32 1.1754944e-38, %v520
    %v522 = vsel %vm519, %v521, %v517
    %v523 = vmul.f32 1.0, %v522
    %v524 = vrcp.pop %v488
    %v525 = vmul.f32 %v488, %v524
    %v526 = vsub.f32 1.0, %v525
    %v527 = vmul.f32 %v524, %v526
    %v528 = vadd.f32 %v524, %v527
    %vm529 = vweird.f32 %v488
    %vm530 = vweird.f32 %v524
    %vm531 = vmor %vm529, %vm530
    %v532 = vsel %vm531, %v524, %v528
    %v533 = vand.u32 2147483647, %v488
    %vm534 = vcmp.eq.f32.partialorder %v533, 8.507059e+37
    %v535 = vand.u32 %v488, 2147483648
    %v536 = vor.u32 1.1754944e-38, %v535
    %v537 = vsel %vm534, %v536, %v532
    %v538 = vmul.f32 1.0, %v537
    %v539 = vrcp.pop %v489
    %v540 = vmul.f32 %v489, %v539
    %v541 = vsub.f32 1.0, %v540
    %v542 = vmul.f32 %v539, %v541
    %v543 = vadd.f32 %v539, %v542
    %vm544 = vweird.f32 %v489
    %vm545 = vweird.f32 %v539
    %vm546 = vmor %vm544, %vm545
    %v547 = vsel %vm546, %v539, %v543
    %v548 = vand.u32 2147483647, %v489
    %vm549 = vcmp.eq.f32.partialorder %v548, 8.507059e+37
    %v550 = vand.u32 %v489, 2147483648
    %v551 = vor.u32 1.1754944e-38, %v550
    %v552 = vsel %vm549, %v551, %v547
    %v553 = vmul.f32 1.0, %v552
    %v554 = vrcp.pop %v490
    %v555 = vmul.f32 %v490, %v554
    %v556 = vsub.f32 1.0, %v555
    %v557 = vmul.f32 %v554, %v556
    %v558 = vadd.f32 %v554, %v557
    %vm559 = vweird.f32 %v490
    %vm560 = vweird.f32 %v554
    %vm561 = vmor %vm559, %vm560
    %v562 = vsel %vm561, %v554, %v558
    %v563 = vand.u32 2147483647, %v490
    %vm564 = vcmp.eq.f32.partialorder %v563, 8.507059e+37
    %v565 = vand.u32 %v490, 2147483648
    %v566 = vor.u32 1.1754944e-38, %v565
    %v567 = vsel %vm564, %v566, %v562
    %v568 = vmul.f32 1.0, %v567
    %v569 = vrcp.pop %v491
    %v570 = vmul.f32 %v491, %v569
    %v571 = vsub.f32 1.0, %v570
    %v572 = vmul.f32 %v569, %v571
    %v573 = vadd.f32 %v569, %v572
    %vm574 = vweird.f32 %v491
    %vm575 = vweird.f32 %v569
    %vm576 = vmor %vm574, %vm575
    %v577 = vsel %vm576, %v569, %v573
    %v578 = vand.u32 2147483647, %v491
    %vm579 = vcmp.eq.f32.partialorder %v578, 8.507059e+37
    %v580 = vand.u32 %v491, 2147483648
    %v581 = vor.u32 1.1754944e-38, %v580
    %v582 = vsel %vm579, %v581, %v577
    %v583 = vmul.f32 1.0, %v582
    %v584 = vrcp.pop %v492
    %v585 = vmul.f32 %v492, %v584
    %v586 = vsub.f32 1.0, %v585
    %v587 = vmul.f32 %v584, %v586
    %v588 = vadd.f32 %v584, %v587
    %vm589 = vweird.f32 %v492
    %vm590 = vweird.f32 %v584
    %vm591 = vmor %vm589, %vm590
    %v592 = vsel %vm591, %v584, %v588
    %v593 = vand.u32 2147483647, %v492
    %vm594 = vcmp.eq.f32.partialorder %v593, 8.507059e+37
    %v595 = vand.u32 %v492, 2147483648
    %v596 = vor.u32 1.1754944e-38, %v595
    %v597 = vsel %vm594, %v596, %v592
    %v598 = vmul.f32 1.0, %v597
    %v599 = vrcp.pop %v493
    %v600 = vmul.f32 %v493, %v599
    %v601 = vsub.f32 1.0, %v600
    %v602 = vmul.f32 %v599, %v601
    %v603 = vadd.f32 %v599, %v602
    %vm604 = vweird.f32 %v493
    %vm605 = vweird.f32 %v599
    %vm606 = vmor %vm604, %vm605
    %v607 = vsel %vm606, %v599, %v603
    %v608 = vand.u32 2147483647, %v493
    %vm609 = vcmp.eq.f32.partialorder %v608, 8.507059e+37
    %v610 = vand.u32 %v493, 2147483648
    %v611 = vor.u32 1.1754944e-38, %v610
    %v612 = vsel %vm609, %v611, %v607
    %v613 = vmul.f32 1.0, %v612
    %v614 = vmul.f32 %v454, %v508
    %v615 = vmul.f32 %v455, %v523
    %v616 = vmul.f32 %v456, %v538
    %v617 = vmul.f32 %v457, %v553
    %v618 = vmul.f32 %v458, %v568
    %v619 = vmul.f32 %v459, %v583
    %v620 = vmul.f32 %v460, %v598
    %v621 = vmul.f32 %v461, %v613
    %s622 = scalar_lea.vmem [#allocation2], 256
    %v623 = vld [vmem:[%s622] sm:$0xff]
    %v624 = vld [vmem:[%s622 + $0x8] sm:$0xff]
    %v625 = vld [vmem:[%s622 + $0x10] sm:$0xff]
    %v626 = vld [vmem:[%s622 + $0x18] sm:$0xff]
    %v627 = vld [vmem:[%s622 + $0x20] sm:$0xff]
    %v628 = vld [vmem:[%s622 + $0x28] sm:$0xff]
    %v629 = vld [vmem:[%s622 + $0x30] sm:$0xff]
    %v630 = vld [vmem:[%s622 + $0x38] sm:$0xff]
    %v631 = vld [vmem:[%s622 + $0x40] sm:$0xff]
    %v632 = vld [vmem:[%s622 + $0x48] sm:$0xff]
    %v633 = vld [vmem:[%s622 + $0x50] sm:$0xff]
    %v634 = vld [vmem:[%s622 + $0x58] sm:$0xff]
    %v635 = vld [vmem:[%s622 + $0x60] sm:$0xff]
    %v636 = vld [vmem:[%s622 + $0x68] sm:$0xff]
    %v637 = vld [vmem:[%s622 + $0x70] sm:$0xff]
    %v638 = vld [vmem:[%s622 + $0x78] sm:$0xff]
    %639 = vmatpush.msra.mxu0 %v638
    %640 = vmatpush.msra.mxu0 %v637
    %641 = vmatpush.msra.mxu0 %v636
    %642 = vmatpush.msra.mxu0 %v635
    %643 = vmatpush.msra.mxu0 %v634
    %644 = vmatpush.msra.mxu0 %v633
    %645 = vmatpush.msra.mxu0 %v632
    %646 = vmatpush.msra.mxu0 %v631
    %647 = vmatpush.msra.mxu0 %v630
    %648 = vmatpush.msra.mxu0 %v629
    %649 = vmatpush.msra.mxu0 %v628
    %650 = vmatpush.msra.mxu0 %v627
    %651 = vmatpush.msra.mxu0 %v626
    %652 = vmatpush.msra.mxu0 %v625
    %653 = vmatpush.msra.mxu0 %v624
    %654 = vmatpush.msra.mxu0 %v623
    %655 = vmatmul.f32.gmra.mxu0 %v614
    %v656 = vpop.f32.mrf.mxu0
    %v657 = vadd.f32 0.0, %v656
    %658 = vmatmul.f32.gmra.mxu0 %v615
    %v659 = vpop.f32.mrf.mxu0
    %v660 = vadd.f32 0.0, %v659
    %661 = vmatmul.f32.gmra.mxu0 %v616
    %v662 = vpop.f32.mrf.mxu0
    %v663 = vadd.f32 0.0, %v662
    %664 = vmatmul.f32.gmra.mxu0 %v617
    %v665 = vpop.f32.mrf.mxu0
    %v666 = vadd.f32 0.0, %v665
    %667 = vmatmul.f32.gmra.mxu0 %v618
    %v668 = vpop.f32.mrf.mxu0
    %v669 = vadd.f32 0.0, %v668
    %670 = vmatmul.f32.gmra.mxu0 %v619
    %v671 = vpop.f32.mrf.mxu0
    %v672 = vadd.f32 0.0, %v671
    %673 = vmatmul.f32.gmra.mxu0 %v620
    %v674 = vpop.f32.mrf.mxu0
    %v675 = vadd.f32 0.0, %v674
    %676 = vmatmul.f32.gmra.mxu0 %v621
    %v677 = vpop.f32.mrf.mxu0
    %v678 = vadd.f32 0.0, %v677
    %679 = vdwg.mxu0
    %680 = vst [vmem:[%s3] sm:$0xff] %v657
    %681 = vst [vmem:[%s3 + $0x10] sm:$0xff] %v660
    %682 = vst [vmem:[%s3 + $0x20] sm:$0xff] %v663
    %683 = vst [vmem:[%s3 + $0x30] sm:$0xff] %v666
    %684 = vst [vmem:[%s3 + $0x40] sm:$0xff] %v669
    %685 = vst [vmem:[%s3 + $0x50] sm:$0xff] %v672
    %686 = vst [vmem:[%s3 + $0x60] sm:$0xff] %v675
    %687 = vst [vmem:[%s3 + $0x70] sm:$0xff] %v678
    %688 = vst [vmem:[%s3 + $0x8] sm:$0xff] %v614
    %689 = vst [vmem:[%s3 + $0x18] sm:$0xff] %v615
    %690 = vst [vmem:[%s3 + $0x28] sm:$0xff] %v616
    %691 = vst [vmem:[%s3 + $0x38] sm:$0xff] %v617
    %692 = vst [vmem:[%s3 + $0x48] sm:$0xff] %v618
    %693 = vst [vmem:[%s3 + $0x58] sm:$0xff] %v619
    %694 = vst [vmem:[%s3 + $0x68] sm:$0xff] %v620
    %695 = vst [vmem:[%s3 + $0x78] sm:$0xff] %v621
    // Predicated region
    $region18: #{mlp_forward.1} parent=1 // pred_check
      _
    $region19: #{mlp_forward.1} parent=1 // pred_check_branch
      %697 = sbr.rel (0) target = $region21
    $region20: #{mlp_forward.1} parent=1 // pred_region
      _
    $region21: #{mlp_forward.1} parent=1 // pred_fallthru
      _
    // Predicated region
    $region22: #{mlp_forward.1} parent=1 // pred_check
      _
    $region23: #{mlp_forward.1} parent=1 // pred_check_branch
      %699 = sbr.rel (0) target = $region25
    $region24: #{mlp_forward.1} parent=1 // pred_region
      _
    $region25: #{mlp_forward.1} parent=1 // pred_fallthru
      _
    %700 = vsyncpa [#allocation3], 1

</llo_original>
